<compile_context>
chip_gen: v7x
topology: tpu7x:2x2x1
jax: 0.10.0
libtpu: 0.0.40
codegen_flags: <defaults>
</compile_context>

<pallas_src>
import functools

import jax
import jax.numpy as jnp
from jax.experimental import pallas as pl
from jax.experimental.pallas import tpu as pltpu

_LANE = 128


def _vmem_capacity_bytes():
    try:
        return int(pltpu.get_tpu_info().vmem_capacity_bytes)
    except Exception:
        return 64 << 20  # conservative default (v7x per-TC VMEM)


def _subject_layers_kernel(subj_ref, x_ref, w_ref, o_ref, *, compute_dtype):
    # subj_ref: SMEM (B,) int32 scalar-prefetch -- consumed only by index_maps.
    del subj_ref
    x = x_ref[0]  # (C, TT)
    w = w_ref[0]  # (D, C)  -- MXU-native (M, K) layout
    if compute_dtype is not None:
        x = x.astype(compute_dtype)
        w = w.astype(compute_dtype)
    o_ref[0] = jax.lax.dot_general(
        w, x,
        dimension_numbers=(((1,), (0,)), ((), ())),  # (D,C) @ (C,TT) -> (D,TT)
        preferred_element_type=jnp.float32,
    ).astype(o_ref.dtype)


def _subject_layers_fused_kernel(x_ref, w_ref, o_ref, *, compute_dtype):
    # Batched small-shape path: several batch elements per grid step.
    x = x_ref[...]  # (Bb, C, TT)
    w = w_ref[...]  # (Bb, D, C)
    if compute_dtype is not None:
        x = x.astype(compute_dtype)
        w = w.astype(compute_dtype)
    o_ref[...] = jnp.einsum(
        'bdc,bct->bdt', w, x, preferred_element_type=jnp.float32
    ).astype(o_ref.dtype)


def subject_layers(x, subjects, weights, *, compute_dtype=None, time_tile=None,
                   fuse_batch=None):
    """Per-subject linear layer.

    x:        (B, C, T)
    subjects: (B,) int
    weights:  (S, C, D)
    returns:  (B, D, T) == einsum('bct,bcd->bdt', x, weights[subjects])
    """
    B, C, T = x.shape
    S, Cw, D = weights.shape
    assert C == Cw, (C, Cw)
    out_dtype = x.dtype
    in_b = jnp.dtype(x.dtype).itemsize
    out_b = jnp.dtype(out_dtype).itemsize

    # Safety clamp (documented deviation: PyTorch would raise on OOB ids).
    subjects = jnp.clip(subjects.astype(jnp.int32), 0, S - 1)

    # One-time layout transform: (S, C, D) -> (S, D, C).  Cache externally if
    # weights are static across calls (inference/serving).
    w_t = jnp.transpose(weights, (0, 2, 1))

    vmem_cap = _vmem_capacity_bytes()
    vmem_budget = int(0.7 * vmem_cap)

    # Lane-dense time tile (multiple of 128).  No host-side padding: the grid
    # uses cdiv and Pallas masks the ragged tail block (T is a free dim).
    if time_tile is None:
        time_tile = 1024 if (T >= 2048 and vmem_cap >= (100 << 20)) else 512
    tt = min(int(time_tile), ((T + _LANE - 1) // _LANE) * _LANE)
    tt = max(_LANE, (tt // _LANE) * _LANE)

    w_slab_bytes = D * C * in_b

    if fuse_batch is None:
        # Fuse batch elements only when both the x tile and the weight slab
        # are tiny (per-step grid overhead / sub-minimum DMA regime).
        fuse_batch = (B > 1 and C * tt * in_b < (1 << 20)
                      and w_slab_bytes < (1 << 20))

    if fuse_batch:
        # Pre-gather per-batch weights (tiny slabs by construction).
        w_g = jnp.take(w_t, subjects, axis=0)  # (B, D, C)
        bb = min(B, 8)

        def step_bytes(t_):
            return (2 * bb * C * t_ * in_b + 2 * bb * D * C * in_b
                    + 2 * bb * D * t_ * out_b)

        while tt > _LANE and step_bytes(tt) > vmem_budget:
            tt = max(_LANE, ((tt // 2) // _LANE) * _LANE)

        vmem_limit = int(min(vmem_budget,
                             max(16 << 20, step_bytes(tt) + (2 << 20))))
        grid = (pl.cdiv(B, bb), pl.cdiv(T, tt))

        return pl.pallas_call(
            functools.partial(_subject_layers_fused_kernel,
                              compute_dtype=compute_dtype),
            out_shape=jax.ShapeDtypeStruct((B, D, T), out_dtype),
            grid=grid,
            in_specs=[
                pl.BlockSpec((bb, C, tt), lambda i, t: (i, 0, t)),
                pl.BlockSpec((bb, D, C), lambda i, t: (i, 0, 0)),
            ],
            out_specs=pl.BlockSpec((bb, D, tt), lambda i, t: (i, 0, t)),
            compiler_params=pltpu.CompilerParams(
                dimension_semantics=("parallel", "parallel"),
                vmem_limit_bytes=vmem_limit,
            ),
        )(x, w_g)

    # ---- main path: one batch element per grid step, scalar-prefetch gather.
    # Single-buffer a large weight slab: it is VMEM-resident across the whole
    # inner t axis anyway, so Buffered(1) only serializes one DMA per batch
    # element while halving its VMEM footprint (matters on v7x's 64 MiB).
    w_buffers = 1 if w_slab_bytes >= (8 << 20) else 2

    def step_bytes(t_):
        return (2 * C * t_ * in_b + w_buffers * w_slab_bytes
                + 2 * D * t_ * out_b)

    while tt > _LANE and step_bytes(tt) > vmem_budget:
        tt = max(_LANE, ((tt // 2) // _LANE) * _LANE)
    # TODO(synk): if the weight slab alone exceeds the VMEM budget, add a
    # K-split grid axis over C with an f32 accumulator + pl.when init/finalize.

    vmem_limit = int(min(vmem_budget, max(16 << 20, step_bytes(tt) + (2 << 20))))
    grid = (B, pl.cdiv(T, tt))

    w_spec_kwargs = dict(pipeline_mode=pl.Buffered(1)) if w_buffers == 1 else {}

    grid_spec = pltpu.PrefetchScalarGridSpec(
        num_scalar_prefetch=1,
        grid=grid,
        in_specs=[
            # x tile for (batch b, time tile t)
            pl.BlockSpec((1, C, tt), lambda b, t, subj: (b, 0, t)),
            # weight slab selected by subjects[b]; block index is constant
            # across the t axis -> fetched once per batch element.
            pl.BlockSpec((1, D, C), lambda b, t, subj: (subj[b], 0, 0),
                         **w_spec_kwargs),
        ],
        out_specs=pl.BlockSpec((1, D, tt), lambda b, t, subj: (b, 0, t)),
    )

    return pl.pallas_call(
        functools.partial(_subject_layers_kernel, compute_dtype=compute_dtype),
        out_shape=jax.ShapeDtypeStruct((B, D, T), out_dtype),
        grid_spec=grid_spec,
        compiler_params=pltpu.CompilerParams(
            # t iterates sequentially within a core (keeps the weight slab
            # resident); megacore split lands on the independent b axis.
            dimension_semantics=("parallel",
                                 "arbitrary" if B > 1 else "parallel"),
            vmem_limit_bytes=vmem_limit,
        ),
    )(subjects, x, w_t)


if __name__ == "__main__":
    # Small shapes consistent with the module.
    B, C, D, T, S = 2, 4, 4, 16, 3

    key = jax.random.PRNGKey(0)
    k_w, k_x, k_s = jax.random.split(key, 3)

    # Deterministic parameter init (init_id=False path): randn * 1/sqrt(C)
    weights = jax.random.normal(k_w, (S, C, D), dtype=jnp.float32) * (1.0 / C ** 0.5)
    x = jax.random.normal(k_x, (B, C, T), dtype=jnp.float32)
    subjects = jax.random.randint(k_s, (B,), 0, S, dtype=jnp.int32)

    # Pure-JAX reference of the PyTorch forward.
    ref = jnp.einsum('bct,bcd->bdt', x, weights[subjects])   # (B, D, T)

    # Exercise both code paths (auto heuristic would pick the fused one here).
    out_fused = jax.block_until_ready(
        subject_layers(x, subjects, weights, fuse_batch=True))
    out_main = jax.block_until_ready(
        subject_layers(x, subjects, weights, fuse_batch=False))

    assert out_fused.shape == (B, D, T)
    assert out_main.shape == (B, D, T)
    assert jnp.allclose(out_fused, ref, atol=1e-5, rtol=1e-5)
    assert jnp.allclose(out_main, ref, atol=1e-5, rtol=1e-5)
    print("KERNEL_OK")
</pallas_src>

<mosaic_0001>
module attributes {stable_mosaic.version = 11 : i64} {
  func.func @_subject_layers_fused_kernel(%arg0: i32, %arg1: i32, %arg2: memref<2x4x128xf32, #tpu.memory_space<vmem>>, %arg3: memref<2x4x4xf32, #tpu.memory_space<vmem>>, %arg4: memref<2x4x128xf32, #tpu.memory_space<vmem>>) attributes {dimension_semantics = [#tpu.dimension_semantics<parallel>, #tpu.dimension_semantics<parallel>], iteration_bounds = array<i64: 1, 1>, scalar_prefetch = 0 : i64, scratch_operands = 0 : i64, tpu.core_type = #tpu.core_type<tc>, window_params = [{transform_indices = @transform_0, window_bounds = array<i64: 2, 4, 128>}, {transform_indices = @transform_1, window_bounds = array<i64: 2, 4, 4>}, {transform_indices = @transform_2, window_bounds = array<i64: 2, 4, 128>}]} {
    %c0 = arith.constant 0 : index
    %c0_0 = arith.constant 0 : index
    %c0_1 = arith.constant 0 : index
    %0 = vector.load %arg2[%c0, %c0_0, %c0_1] : memref<2x4x128xf32, #tpu.memory_space<vmem>>, vector<2x4x128xf32>
    %c0_2 = arith.constant 0 : index
    %c0_3 = arith.constant 0 : index
    %c0_4 = arith.constant 0 : index
    %1 = vector.load %arg3[%c0_2, %c0_3, %c0_4] : memref<2x4x4xf32, #tpu.memory_space<vmem>>, vector<2x4x4xf32>
    "tpu.trace_start"() <{level = 10 : i32, message = "bdc,bct->bdt"}> : () -> ()
    %cst = arith.constant dense<0.000000e+00> : vector<2x4x128xf32>
    %2 = tpu.matmul %1, %0, %cst {dimension_numbers = #tpu.dot_dimension_numbers<[2], [1], [1], [2], [0, 0, 0, 1, 1, 2], [0], [0]>} : vector<2x4x4xf32>, vector<2x4x128xf32>, vector<2x4x128xf32> -> vector<2x4x128xf32>
    "tpu.trace_stop"() : () -> ()
    %c0_5 = arith.constant 0 : index
    %c0_6 = arith.constant 0 : index
    %c0_7 = arith.constant 0 : index
    %3 = vector.load %arg4[%c0_5, %c0_6, %c0_7] : memref<2x4x128xf32, #tpu.memory_space<vmem>>, vector<2x4x128xf32>
    tpu.vector_store %arg4[%c0_5, %c0_6, %c0_7], %2 {strides = array<i32>} : memref<2x4x128xf32, #tpu.memory_space<vmem>>, vector<2x4x128xf32>,
    return
  }
  func.func @transform_0(%arg0: i32, %arg1: i32) -> (i32, i32, i32) {
    %c0_i32 = arith.constant 0 : i32
    %c0_i32_0 = arith.constant 0 : i32
    return %arg0, %c0_i32, %arg1 : i32, i32, i32
  }
  func.func @transform_1(%arg0: i32, %arg1: i32) -> (i32, i32, i32) {
    %c0_i32 = arith.constant 0 : i32
    %c0_i32_0 = arith.constant 0 : i32
    %c0_i32_1 = arith.constant 0 : i32
    return %arg0, %c0_i32, %c0_i32_0 : i32, i32, i32
  }
  func.func @transform_2(%arg0: i32, %arg1: i32) -> (i32, i32, i32) {
    %c0_i32 = arith.constant 0 : i32
    %c0_i32_0 = arith.constant 0 : i32
    return %arg0, %c0_i32, %arg1 : i32, i32, i32
  }
}

</mosaic_0001>

<llo_original>
// kernel: tpu_custom_call.1
$region0: #{tpu_custom_call.1}
  #allocation0 [shape = 'u32[]', space=smem, size = 0x4, offset = 0x4, fixed_abs, tag = 'smem constant byte address 0x4 - core index']
  #allocation1 [shape = 'u32[144,128]{1,0:T(1,128)}', space=vmem, size = 0x12000, scoped, tag = 'internal scratch']
  %s0 = inlined_call_operand.hbm [shape: f32[2,4,16], index: 0, kind: input, shape index: {}]
  %s1 = inlined_call_operand.hbm [shape: f32[2,4,4], index: 1, kind: input, shape index: {}]
  %s2 = inlined_call_operand.hbm [shape: f32[2,4,16], index: 2, kind: output, shape index: {}]
  %s3 = sld [smem:[#allocation0]]
  $region26: #{tpu_custom_call.1} parent=0
    _
  %s5 = ssub.s32 1, %s3
  %s6 = scalar_select 0, %s5, %s3
  $region1: #{tpu_custom_call.1} parent=0
    #allocation2 [shape = 'u8[4096]{0}', space=vmem, size = 0x1000, scoped, tag = 'input window, operand 0, single buffered']
    #allocation3 [shape = 's32[1]{0}', space=sflag, size = 0x4, scoped, tag = 'scoped memory for tpu_custom_call.1']
    #allocation4 [shape = 's32[1]{0}', space=sflag, size = 0x4, scoped, tag = 'scoped memory for tpu_custom_call.1']
    #allocation5 [shape = 'u8[4096]{0}', space=vmem, size = 0x1000, scoped, tag = 'input window, operand 1, single buffered']
    #allocation6 [shape = 's32[1]{0}', space=sflag, size = 0x4, scoped, tag = 'scoped memory for tpu_custom_call.1']
    #allocation7 [shape = 'u8[4096]{0}', space=vmem, size = 0x1000, scoped, tag = 'output window, operand 0, single buffered']
    %7 = vsyncpa [#allocation3], 0
    %8 = vsyncpa [#allocation6], 0
    %9 = vsyncpa [#allocation4], 0
    // Predicated region
    $region2: #{tpu_custom_call.1} parent=1 // pred_check
      _
    $region3: #{tpu_custom_call.1} parent=1 // pred_check_branch
      %11 = sbr.rel (0) target = $region5
    $region4: #{tpu_custom_call.1} parent=1 // pred_region
      %s13 = ssub.s32 128, 128
      %14 = vsyncadd [#allocation3], %s13
      %s15 = sshll.u32 [#allocation2], 4
      %s16 = int_to_ptr.vmem [resolvable:$true] %s15
      %21 = dma.hbm_to_vmem [thread:$0]  %s0, 128, %s16, [#allocation3], 64, 64, 4
    $region5: #{tpu_custom_call.1} parent=1 // pred_fallthru
      _
    // Predicated region
    $region6: #{tpu_custom_call.1} parent=1 // pred_check
      _
    $region7: #{tpu_custom_call.1} parent=1 // pred_check_branch
      %23 = sbr.rel (0) target = $region9
    $region8: #{tpu_custom_call.1} parent=1 // pred_region
      %s25 = ssub.s32 128, 128
      %26 = vsyncadd [#allocation6], %s25
      %s27 = sshll.u32 [#allocation5], 4
      %s28 = int_to_ptr.vmem [resolvable:$true] %s27
      %33 = dma.hbm_to_vmem [thread:$0]  %s1, 128, %s28, [#allocation6], 64, 64, 4
    $region9: #{tpu_custom_call.1} parent=1 // pred_fallthru
      _
    // Predicated region
    $region10: #{tpu_custom_call.1} parent=1 // pred_check
      _
    $region11: #{tpu_custom_call.1} parent=1 // pred_check_branch
      %35 = sbr.rel (0) target = $region13
    $region12: #{tpu_custom_call.1} parent=1 // pred_region
      %36 = dma.done [#allocation3], 128
    $region13: #{tpu_custom_call.1} parent=1 // pred_fallthru
      _
    // Predicated region
    $region14: #{tpu_custom_call.1} parent=1 // pred_check
      _
    $region15: #{tpu_custom_call.1} parent=1 // pred_check_branch
      %38 = sbr.rel (0) target = $region17
    $region16: #{tpu_custom_call.1} parent=1 // pred_region
      %39 = dma.done [#allocation6], 128
    $region17: #{tpu_custom_call.1} parent=1 // pred_fallthru
      _
    %v40 = vld [vmem:[#allocation2] sm:$0xf]
    %v41 = vld [vmem:[#allocation2 + $0x4] sm:$0xf]
    %v42 = vld [vmem:[#allocation5] sm:$0xf]
    %v43 = vld [vmem:[#allocation5 + $0x4] sm:$0xf]
    %vm44 = vcmask 31744
    %v46 = vsel %vm44, %v42, 0
    %vm48 = vcmask 1043456
    %v50 = vsel %vm48, %v40, 0
    %52 = vmatprep.subr.mxu0 0.0
    %53 = vmatpush1.msra.mxu0 %v50
    %54 = vmatprep.subr.mxu0 0.0
    %55 = vmatpush1.msra.mxu0 0.0
    %56 = vmatprep.subr.mxu0 0.0
    %57 = vmatpush1.msra.mxu0 0.0
    %58 = vmatprep.subr.mxu0 0.0
    %59 = vmatpush1.msra.mxu0 0.0
    %60 = vmatprep.subr.mxu0 0.0
    %61 = vmatpush1.msra.mxu0 0.0
    %62 = vmatprep.subr.mxu0 0.0
    %63 = vmatpush1.msra.mxu0 0.0
    %64 = vmatprep.subr.mxu0 0.0
    %65 = vmatpush1.msra.mxu0 0.0
    %66 = vmatprep.subr.mxu0 0.0
    %67 = vmatpush1.msra.mxu0 0.0
    %68 = vmatprep.subr.mxu0 0.0
    %69 = vmatpush1.msra.mxu0 0.0
    %70 = vmatprep.subr.mxu0 0.0
    %71 = vmatpush1.msra.mxu0 0.0
    %72 = vmatprep.subr.mxu0 0.0
    %73 = vmatpush1.msra.mxu0 0.0
    %74 = vmatprep.subr.mxu0 0.0
    %75 = vmatpush1.msra.mxu0 0.0
    %76 = vmatprep.subr.mxu0 0.0
    %77 = vmatpush1.msra.mxu0 0.0
    %78 = vmatprep.subr.mxu0 0.0
    %79 = vmatpush1.msra.mxu0 0.0
    %80 = vmatprep.subr.mxu0 0.0
    %81 = vmatpush1.msra.mxu0 0.0
    %82 = vmatprep.subr.mxu0 0.0
    %83 = vmatpush1.msra.mxu0 0.0
    %84 = vmatprep.subr.mxu0 0.0
    %85 = vmatpush1.msra.mxu0 0.0
    %86 = vmatprep.subr.mxu0 0.0
    %87 = vmatpush1.msra.mxu0 0.0
    %88 = vmatprep.subr.mxu0 0.0
    %89 = vmatpush1.msra.mxu0 0.0
    %90 = vmatprep.subr.mxu0 0.0
    %91 = vmatpush1.msra.mxu0 0.0
    %92 = vmatprep.subr.mxu0 0.0
    %93 = vmatpush1.msra.mxu0 0.0
    %94 = vmatprep.subr.mxu0 0.0
    %95 = vmatpush1.msra.mxu0 0.0
    %96 = vmatprep.subr.mxu0 0.0
    %97 = vmatpush1.msra.mxu0 0.0
    %98 = vmatprep.subr.mxu0 0.0
    %99 = vmatpush1.msra.mxu0 0.0
    %100 = vmatprep.subr.mxu0 0.0
    %101 = vmatpush1.msra.mxu0 0.0
    %102 = vmatprep.subr.mxu0 0.0
    %103 = vmatpush1.msra.mxu0 0.0
    %104 = vmatprep.subr.mxu0 0.0
    %105 = vmatpush1.msra.mxu0 0.0
    %106 = vmatprep.subr.mxu0 0.0
    %107 = vmatpush1.msra.mxu0 0.0
    %108 = vmatprep.subr.mxu0 0.0
    %109 = vmatpush1.msra.mxu0 0.0
    %110 = vmatprep.subr.mxu0 0.0
    %111 = vmatpush1.msra.mxu0 0.0
    %112 = vmatprep.subr.mxu0 0.0
    %113 = vmatpush1.msra.mxu0 0.0
    %114 = vmatprep.subr.mxu0 0.0
    %115 = vmatpush1.msra.mxu0 0.0
    %116 = vmatprep.mubr.f32.mxu0 0.0
    %117 = vmatmul.mubr.f32.gmra.mrb[0].mxu0 %v46
    %v118 = vpop.f32.mrb[0].mxu0
    %v119 = vadd.f32 0.0, %v118
    %v120 = vpop.f32.mrb[0].mxu0
    %121 = vdwg.mxu0
    %v123 = vsel %vm44, %v43, 0
    %v126 = vsel %vm48, %v41, 0
    %128 = vmatprep.subr.mxu0 0.0
    %129 = vmatpush1.msra.mxu0 %v126
    %130 = vmatprep.subr.mxu0 0.0
    %131 = vmatpush1.msra.mxu0 0.0
    %132 = vmatprep.subr.mxu0 0.0
    %133 = vmatpush1.msra.mxu0 0.0
    %134 = vmatprep.subr.mxu0 0.0
    %135 = vmatpush1.msra.mxu0 0.0
    %136 = vmatprep.subr.mxu0 0.0
    %137 = vmatpush1.msra.mxu0 0.0
    %138 = vmatprep.subr.mxu0 0.0
    %139 = vmatpush1.msra.mxu0 0.0
    %140 = vmatprep.subr.mxu0 0.0
    %141 = vmatpush1.msra.mxu0 0.0
    %142 = vmatprep.subr.mxu0 0.0
    %143 = vmatpush1.msra.mxu0 0.0
    %144 = vmatprep.subr.mxu0 0.0
    %145 = vmatpush1.msra.mxu0 0.0
    %146 = vmatprep.subr.mxu0 0.0
    %147 = vmatpush1.msra.mxu0 0.0
    %148 = vmatprep.subr.mxu0 0.0
    %149 = vmatpush1.msra.mxu0 0.0
    %150 = vmatprep.subr.mxu0 0.0
    %151 = vmatpush1.msra.mxu0 0.0
    %152 = vmatprep.subr.mxu0 0.0
    %153 = vmatpush1.msra.mxu0 0.0
    %154 = vmatprep.subr.mxu0 0.0
    %155 = vmatpush1.msra.mxu0 0.0
    %156 = vmatprep.subr.mxu0 0.0
    %157 = vmatpush1.msra.mxu0 0.0
    %158 = vmatprep.subr.mxu0 0.0
    %159 = vmatpush1.msra.mxu0 0.0
    %160 = vmatprep.subr.mxu0 0.0
    %161 = vmatpush1.msra.mxu0 0.0
    %162 = vmatprep.subr.mxu0 0.0
    %163 = vmatpush1.msra.mxu0 0.0
    %164 = vmatprep.subr.mxu0 0.0
    %165 = vmatpush1.msra.mxu0 0.0
    %166 = vmatprep.subr.mxu0 0.0
    %167 = vmatpush1.msra.mxu0 0.0
    %168 = vmatprep.subr.mxu0 0.0
    %169 = vmatpush1.msra.mxu0 0.0
    %170 = vmatprep.subr.mxu0 0.0
    %171 = vmatpush1.msra.mxu0 0.0
    %172 = vmatprep.subr.mxu0 0.0
    %173 = vmatpush1.msra.mxu0 0.0
    %174 = vmatprep.subr.mxu0 0.0
    %175 = vmatpush1.msra.mxu0 0.0
    %176 = vmatprep.subr.mxu0 0.0
    %177 = vmatpush1.msra.mxu0 0.0
    %178 = vmatprep.subr.mxu0 0.0
    %179 = vmatpush1.msra.mxu0 0.0
    %180 = vmatprep.subr.mxu0 0.0
    %181 = vmatpush1.msra.mxu0 0.0
    %182 = vmatprep.subr.mxu0 0.0
    %183 = vmatpush1.msra.mxu0 0.0
    %184 = vmatprep.subr.mxu0 0.0
    %185 = vmatpush1.msra.mxu0 0.0
    %186 = vmatprep.subr.mxu0 0.0
    %187 = vmatpush1.msra.mxu0 0.0
    %188 = vmatprep.subr.mxu0 0.0
    %189 = vmatpush1.msra.mxu0 0.0
    %190 = vmatprep.subr.mxu0 0.0
    %191 = vmatpush1.msra.mxu0 0.0
    %192 = vmatprep.mubr.f32.mxu0 0.0
    %193 = vmatmul.mubr.f32.gmra.mrb[0].mxu0 %v123
    %v194 = vpop.f32.mrb[0].mxu0
    %v195 = vadd.f32 0.0, %v194
    %v196 = vpop.f32.mrb[0].mxu0
    %197 = vdwg.mxu0
    %198 = vst [vmem:[#allocation7] sm:$0xf] %v119
    %199 = vst [vmem:[#allocation7 + $0x4] sm:$0xf] %v195
    // Predicated region
    $region18: #{tpu_custom_call.1} parent=1 // pred_check
      _
    $region19: #{tpu_custom_call.1} parent=1 // pred_check_branch
      %201 = sbr.rel (0) target = $region21
    $region20: #{tpu_custom_call.1} parent=1 // pred_region
      %s203 = ssub.s32 128, 128
      %204 = vsyncadd [#allocation4], %s203
      %s205 = sshll.u32 [#allocation7], 4
      %s206 = int_to_ptr.vmem [resolvable:$true] %s205
      %211 = dma.vmem_to_hbm [thread:$0]  %s206, 128, %s2, [#allocation4], 64, 64, 4
    $region21: #{tpu_custom_call.1} parent=1 // pred_fallthru
      _
    // Predicated region
    $region22: #{tpu_custom_call.1} parent=1 // pred_check
      _
    $region23: #{tpu_custom_call.1} parent=1 // pred_check_branch
      %213 = sbr.rel (0) target = $region25
    $region24: #{tpu_custom_call.1} parent=1 // pred_region
      %214 = dma.done [#allocation4], 128
    $region25: #{tpu_custom_call.1} parent=1 // pred_fallthru
      _
    %215 = vsyncpa [#allocation3], 1
    %216 = vsyncpa [#allocation6], 1
    %217 = vsyncpa [#allocation4], 1

</llo_original>
